<compile_context>
chip_gen: v7x
topology: tpu7x:2x2x1
jax: 0.10.0
libtpu: 0.0.40
codegen_flags: <defaults>
</compile_context>

<pallas_src>
import functools

import jax
import jax.numpy as jnp
from jax.experimental import pallas as pl
from jax.experimental.pallas import tpu as pltpu


OUT_RAW = 4        # real bbox_pred width
OUT_PAD = 128      # lane-dense padded width


def _round_up(x, m):
    return (x + m - 1) // m * m


def _box_regression_kernel(x_ref, w6_ref, b6_ref, w7_ref, b7_ref,
                           wp_ref, bp_ref, o_ref):
    # fc6 + ReLU  (bf16 operands, f32 accumulate, f32 elementwise)
    h = jnp.dot(x_ref[...], w6_ref[...], preferred_element_type=jnp.float32)
    h = jnp.maximum(h + b6_ref[...], 0.0)
    # fc7 + ReLU
    h = jnp.dot(h.astype(jnp.bfloat16), w7_ref[...],
                preferred_element_type=jnp.float32)
    h = jnp.maximum(h + b7_ref[...], 0.0)
    # bbox_pred (padded to 128 lanes) + ReLU
    out = jnp.dot(h.astype(jnp.bfloat16), wp_ref[...],
                  preferred_element_type=jnp.float32)
    out = jnp.maximum(out + bp_ref[...], 0.0)
    o_ref[...] = out.astype(o_ref.dtype)


@functools.partial(jax.jit, static_argnames=())
def box_regression_forward(x_nchw, params):
    """x_nchw: (N, C, H, W) float32. params: dict of (in,out) f32 weights and (1,out) f32 biases."""
    n = x_nchw.shape[0]
    in_features = x_nchw.shape[1] * x_nchw.shape[2] * x_nchw.shape[3]
    x = x_nchw.reshape(n, in_features)            # == torch .flatten(start_dim=1)

    w6, b6 = params["w6"], params["b6"]
    w7, b7 = params["w7"], params["b7"]
    wp, bp = params["wp"], params["bp"]
    rep = w6.shape[1]

    # ---- batch tiling ------------------------------------------------------
    tm = 256 if n >= 256 else _round_up(n, 8)
    n_pad = _round_up(n, tm)
    if n_pad != n:
        x = jnp.pad(x, ((0, n_pad - n), (0, 0)))
    num_tiles = n_pad // tm

    # ---- operand prep: bf16 weights, lane-dense (128-wide) final layer -----
    x_b = x.astype(jnp.bfloat16)
    w6_b = w6.astype(jnp.bfloat16)
    w7_b = w7.astype(jnp.bfloat16)
    wp_p = jnp.pad(wp, ((0, 0), (0, OUT_PAD - OUT_RAW))).astype(jnp.bfloat16)
    bp_p = jnp.pad(bp, ((0, 0), (0, OUT_PAD - OUT_RAW)))   # bias stays f32

    # ---- VMEM budget (fits v5e/v6e/v7x) ------------------------------------
    weight_bytes = 2 * (in_features * rep + rep * rep + rep * OUT_PAD)
    bias_bytes = 4 * (2 * rep + OUT_PAD)
    io_bytes = 2 * (2 * tm * in_features) + 2 * (4 * tm * OUT_PAD)  # double-buffered
    interm_bytes = 2 * (4 * tm * rep)
    vmem_bytes = int(min(max(2 * (weight_bytes + bias_bytes + io_bytes + interm_bytes),
                             16 * 1024 * 1024),
                         64 * 1024 * 1024))

    const = lambda shape: pl.BlockSpec(shape, lambda i: tuple(0 for _ in shape))

    flops = 2 * n_pad * (in_features * rep + rep * rep + rep * OUT_PAD)
    bytes_accessed = (x_b.size * 2 + weight_bytes + bias_bytes
                      + n_pad * OUT_PAD * 4)

    out = pl.pallas_call(
        _box_regression_kernel,
        out_shape=jax.ShapeDtypeStruct((n_pad, OUT_PAD), jnp.float32),
        grid_spec=pl.GridSpec(
            grid=(num_tiles,),
            in_specs=[
                pl.BlockSpec((tm, in_features), lambda i: (i, 0)),   # x tile
                const((in_features, rep)),                           # w6 (resident)
                const((1, rep)),                                     # b6
                const((rep, rep)),                                   # w7
                const((1, rep)),                                     # b7
                const((rep, OUT_PAD)),                               # wp (padded)
                const((1, OUT_PAD)),                                 # bp (padded)
            ],
            out_specs=pl.BlockSpec((tm, OUT_PAD), lambda i: (i, 0)),
        ),
        compiler_params=pltpu.CompilerParams(
            dimension_semantics=("parallel",),
            vmem_limit_bytes=vmem_bytes,
        ),
        cost_estimate=pl.CostEstimate(
            flops=flops, transcendentals=0, bytes_accessed=bytes_accessed),
    )(x_b, w6_b, b6, w7_b, b7, wp_p, bp_p)

    return out[:n, :OUT_RAW]


def init_params(key, in_features, representation_size):
    """Deterministic init mimicking torch.nn.Linear default (U[-1/sqrt(fan_in), +])."""
    ks = jax.random.split(key, 6)

    def linear(kw, kb, fan_in, fan_out):
        bound = 1.0 / jnp.sqrt(jnp.float32(fan_in))
        w = jax.random.uniform(kw, (fan_in, fan_out), jnp.float32, -bound, bound)
        b = jax.random.uniform(kb, (1, fan_out), jnp.float32, -bound, bound)
        return w, b

    w6, b6 = linear(ks[0], ks[1], in_features, representation_size)
    w7, b7 = linear(ks[2], ks[3], representation_size, representation_size)
    wp, bp = linear(ks[4], ks[5], representation_size, OUT_RAW)
    return {"w6": w6, "b6": b6, "w7": w7, "b7": b7, "wp": wp, "bp": bp}


if __name__ == "__main__":
    # Small shapes consistent with the module: (N, C, roi, roi) -> in_channels = C*roi*roi
    N, C, ROI = 2, 4, 16
    IN_FEATURES = C * ROI * ROI          # 1024
    REPRESENTATION_SIZE = 256            # light stand-in for the 1024 default

    key = jax.random.PRNGKey(0)
    kx, kp = jax.random.split(key)
    x = jax.random.normal(kx, (N, C, ROI, ROI), jnp.float32)
    params = init_params(kp, IN_FEATURES, REPRESENTATION_SIZE)

    out = box_regression_forward(x, params)
    out = jax.block_until_ready(out)
    assert out.shape == (N, OUT_RAW)

    # Reference using the same mixed precision (bf16 operands, f32 accumulation).
    xf = x.reshape(N, IN_FEATURES)
    h = jnp.dot(xf.astype(jnp.bfloat16), params["w6"].astype(jnp.bfloat16),
                preferred_element_type=jnp.float32)
    h = jnp.maximum(h + params["b6"], 0.0)
    h = jnp.dot(h.astype(jnp.bfloat16), params["w7"].astype(jnp.bfloat16),
                preferred_element_type=jnp.float32)
    h = jnp.maximum(h + params["b7"], 0.0)
    ref = jnp.dot(h.astype(jnp.bfloat16), params["wp"].astype(jnp.bfloat16),
                  preferred_element_type=jnp.float32)
    ref = jnp.maximum(ref + params["bp"], 0.0)
    assert jnp.allclose(out, ref, atol=1e-2, rtol=1e-2), (
        f"max abs diff {jnp.max(jnp.abs(out - ref))}")

    # Loose sanity check against a pure-f32 reference as well.
    h32 = jnp.maximum(xf @ params["w6"] + params["b6"], 0.0)
    h32 = jnp.maximum(h32 @ params["w7"] + params["b7"], 0.0)
    ref32 = jnp.maximum(h32 @ params["wp"] + params["bp"], 0.0)
    assert jnp.allclose(out, ref32, atol=5e-2, rtol=5e-2)

    print("KERNEL_OK")
</pallas_src>

<mosaic_0001>
module attributes {stable_mosaic.version = 11 : i64} {
  func.func @_box_regression_kernel(%arg0: i32, %arg1: memref<8x1024xbf16, #tpu.memory_space<vmem>>, %arg2: memref<1024x256xbf16, #tpu.memory_space<vmem>>, %arg3: memref<1x256xf32, #tpu.memory_space<vmem>>, %arg4: memref<256x256xbf16, #tpu.memory_space<vmem>>, %arg5: memref<1x256xf32, #tpu.memory_space<vmem>>, %arg6: memref<256x128xbf16, #tpu.memory_space<vmem>>, %arg7: memref<1x128xf32, #tpu.memory_space<vmem>>, %arg8: memref<8x128xf32, #tpu.memory_space<vmem>>) attributes {dimension_semantics = [#tpu.dimension_semantics<parallel>], iteration_bounds = array<i64: 1>, scalar_prefetch = 0 : i64, scratch_operands = 0 : i64, tpu.core_type = #tpu.core_type<tc>, window_params = [{transform_indices = @transform_0, window_bounds = array<i64: 8, 1024>}, {pipeline_mode = #tpu.pipeline_mode<synchronous>, transform_indices = @transform_1, window_bounds = array<i64: 1024, 256>}, {pipeline_mode = #tpu.pipeline_mode<synchronous>, transform_indices = @transform_2, window_bounds = array<i64: 1, 256>}, {pipeline_mode = #tpu.pipeline_mode<synchronous>, transform_indices = @transform_3, window_bounds = array<i64: 256, 256>}, {pipeline_mode = #tpu.pipeline_mode<synchronous>, transform_indices = @transform_4, window_bounds = array<i64: 1, 256>}, {pipeline_mode = #tpu.pipeline_mode<synchronous>, transform_indices = @transform_5, window_bounds = array<i64: 256, 128>}, {pipeline_mode = #tpu.pipeline_mode<synchronous>, transform_indices = @transform_6, window_bounds = array<i64: 1, 128>}, {transform_indices = @transform_7, window_bounds = array<i64: 8, 128>}]} {
    %c0 = arith.constant 0 : index
    %c0_0 = arith.constant 0 : index
    %0 = vector.load %arg1[%c0, %c0_0] : memref<8x1024xbf16, #tpu.memory_space<vmem>>, vector<8x1024xbf16>
    %c0_1 = arith.constant 0 : index
    %c0_2 = arith.constant 0 : index
    %1 = vector.load %arg2[%c0_1, %c0_2] : memref<1024x256xbf16, #tpu.memory_space<vmem>>, vector<1024x256xbf16>
    %cst = arith.constant dense<0.000000e+00> : vector<8x256xf32>
    %2 = tpu.matmul %0, %1, %cst {dimension_numbers = #tpu.dot_dimension_numbers<[1], [0], [0], [1], [0, 0, 1, 1], [], []>} : vector<8x1024xbf16>, vector<1024x256xbf16>, vector<8x256xf32> -> vector<8x256xf32>
    %c0_3 = arith.constant 0 : index
    %c0_4 = arith.constant 0 : index
    %3 = vector.load %arg3[%c0_3, %c0_4] : memref<1x256xf32, #tpu.memory_space<vmem>>, vector<1x256xf32>
    %4 = vector.broadcast %3 : vector<1x256xf32> to vector<8x256xf32>
    %5 = arith.addf %2, %4 : vector<8x256xf32>
    %cst_5 = arith.constant 0.000000e+00 : f32
    %6 = vector.broadcast %cst_5 : f32 to vector<8x256xf32>
    %7 = arith.maximumf %5, %6 : vector<8x256xf32>
    %8 = arith.truncf %7 : vector<8x256xf32> to vector<8x256xbf16>
    %c0_6 = arith.constant 0 : index
    %c0_7 = arith.constant 0 : index
    %9 = vector.load %arg4[%c0_6, %c0_7] : memref<256x256xbf16, #tpu.memory_space<vmem>>, vector<256x256xbf16>
    %cst_8 = arith.constant dense<0.000000e+00> : vector<8x256xf32>
    %10 = tpu.matmul %8, %9, %cst_8 {dimension_numbers = #tpu.dot_dimension_numbers<[1], [0], [0], [1], [0, 0, 1, 1], [], []>} : vector<8x256xbf16>, vector<256x256xbf16>, vector<8x256xf32> -> vector<8x256xf32>
    %c0_9 = arith.constant 0 : index
    %c0_10 = arith.constant 0 : index
    %11 = vector.load %arg5[%c0_9, %c0_10] : memref<1x256xf32, #tpu.memory_space<vmem>>, vector<1x256xf32>
    %12 = vector.broadcast %11 : vector<1x256xf32> to vector<8x256xf32>
    %13 = arith.addf %10, %12 : vector<8x256xf32>
    %cst_11 = arith.constant 0.000000e+00 : f32
    %14 = vector.broadcast %cst_11 : f32 to vector<8x256xf32>
    %15 = arith.maximumf %13, %14 : vector<8x256xf32>
    %16 = arith.truncf %15 : vector<8x256xf32> to vector<8x256xbf16>
    %c0_12 = arith.constant 0 : index
    %c0_13 = arith.constant 0 : index
    %17 = vector.load %arg6[%c0_12, %c0_13] : memref<256x128xbf16, #tpu.memory_space<vmem>>, vector<256x128xbf16>
    %cst_14 = arith.constant dense<0.000000e+00> : vector<8x128xf32>
    %18 = tpu.matmul %16, %17, %cst_14 {dimension_numbers = #tpu.dot_dimension_numbers<[1], [0], [0], [1], [0, 0, 1, 1], [], []>} : vector<8x256xbf16>, vector<256x128xbf16>, vector<8x128xf32> -> vector<8x128xf32>
    %c0_15 = arith.constant 0 : index
    %c0_16 = arith.constant 0 : index
    %19 = vector.load %arg7[%c0_15, %c0_16] : memref<1x128xf32, #tpu.memory_space<vmem>>, vector<1x128xf32>
    %20 = vector.broadcast %19 : vector<1x128xf32> to vector<8x128xf32>
    %21 = arith.addf %18, %20 : vector<8x128xf32>
    %cst_17 = arith.constant 0.000000e+00 : f32
    %22 = vector.broadcast %cst_17 : f32 to vector<8x128xf32>
    %23 = arith.maximumf %21, %22 : vector<8x128xf32>
    %c0_18 = arith.constant 0 : index
    %c0_19 = arith.constant 0 : index
    %24 = vector.load %arg8[%c0_18, %c0_19] : memref<8x128xf32, #tpu.memory_space<vmem>>, vector<8x128xf32>
    tpu.vector_store %arg8[%c0_18, %c0_19], %23 {strides = array<i32>} : memref<8x128xf32, #tpu.memory_space<vmem>>, vector<8x128xf32>,
    return
  }
  func.func @transform_0(%arg0: i32) -> (i32, i32) {
    %c0_i32 = arith.constant 0 : i32
    %c0_i32_0 = arith.constant 0 : i32
    return %arg0, %c0_i32 : i32, i32
  }
  func.func @transform_1(%arg0: i32) -> (i32, i32) {
    %c0_i32 = arith.constant 0 : i32
    %c0_i32_0 = arith.constant 0 : i32
    %c0_i32_1 = arith.constant 0 : i32
    return %c0_i32, %c0_i32_0 : i32, i32
  }
  func.func @transform_2(%arg0: i32) -> (i32, i32) {
    %c0_i32 = arith.constant 0 : i32
    %c0_i32_0 = arith.constant 0 : i32
    %c0_i32_1 = arith.constant 0 : i32
    return %c0_i32, %c0_i32_0 : i32, i32
  }
  func.func @transform_3(%arg0: i32) -> (i32, i32) {
    %c0_i32 = arith.constant 0 : i32
    %c0_i32_0 = arith.constant 0 : i32
    %c0_i32_1 = arith.constant 0 : i32
    return %c0_i32, %c0_i32_0 : i32, i32
  }
  func.func @transform_4(%arg0: i32) -> (i32, i32) {
    %c0_i32 = arith.constant 0 : i32
    %c0_i32_0 = arith.constant 0 : i32
    %c0_i32_1 = arith.constant 0 : i32
    return %c0_i32, %c0_i32_0 : i32, i32
  }
  func.func @transform_5(%arg0: i32) -> (i32, i32) {
    %c0_i32 = arith.constant 0 : i32
    %c0_i32_0 = arith.constant 0 : i32
    %c0_i32_1 = arith.constant 0 : i32
    return %c0_i32, %c0_i32_0 : i32, i32
  }
  func.func @transform_6(%arg0: i32) -> (i32, i32) {
    %c0_i32 = arith.constant 0 : i32
    %c0_i32_0 = arith.constant 0 : i32
    %c0_i32_1 = arith.constant 0 : i32
    return %c0_i32, %c0_i32_0 : i32, i32
  }
  func.func @transform_7(%arg0: i32) -> (i32, i32) {
    %c0_i32 = arith.constant 0 : i32
    %c0_i32_0 = arith.constant 0 : i32
    return %arg0, %c0_i32 : i32, i32
  }
}

</mosaic_0001>

<llo_original>
// kernel: box_regression_forward.1
$region0: #{box_regression_forward.1}
  #allocation0 [shape = 'u32[]', space=smem, size = 0x4, offset = 0x4, fixed_abs, tag = 'smem constant byte address 0x4 - core index']
  #allocation1 [shape = 'u32[144,128]{1,0:T(1,128)}', space=vmem, size = 0x12000, scoped, tag = 'internal scratch']
  %s0 = inlined_call_operand.vmem [shape: bf16[8,1024], index: 0, kind: input, shape index: {}]
  %s1 = inlined_call_operand.vmem [shape: bf16[1024,256], index: 1, kind: input, shape index: {}]
  %s2 = inlined_call_operand.vmem [shape: f32[1,256], index: 2, kind: input, shape index: {}]
  %s3 = inlined_call_operand.vmem [shape: bf16[256,256], index: 3, kind: input, shape index: {}]
  %s4 = inlined_call_operand.vmem [shape: f32[1,256], index: 4, kind: input, shape index: {}]
  %s5 = inlined_call_operand.vmem [shape: bf16[256,128], index: 5, kind: input, shape index: {}]
  %s6 = inlined_call_operand.vmem [shape: f32[1,128], index: 6, kind: input, shape index: {}]
  %s7 = inlined_call_operand.vmem [shape: f32[8,128], index: 7, kind: output, shape index: {}]
  %s8 = sld [smem:[#allocation0]]
  $region38: #{box_regression_forward.1} parent=0
    _
  %s10 = ssub.s32 1, %s8
  %s11 = scalar_select 0, %s10, %s8
  // Predicated region
  $region2: #{box_regression_forward.1} parent=0 // pred_check
    _
  $region3: #{box_regression_forward.1} parent=0 // pred_check_branch
    %13 = sbr.rel (0) target = $region5
  $region4: #{box_regression_forward.1} parent=0 // pred_region
    _
  $region5: #{box_regression_forward.1} parent=0 // pred_fallthru
    _
  // Predicated region
  $region6: #{box_regression_forward.1} parent=0 // pred_check
    _
  $region7: #{box_regression_forward.1} parent=0 // pred_check_branch
    %15 = sbr.rel (0) target = $region9
  $region8: #{box_regression_forward.1} parent=0 // pred_region
    _
  $region9: #{box_regression_forward.1} parent=0 // pred_fallthru
    _
  // Predicated region
  $region10: #{box_regression_forward.1} parent=0 // pred_check
    _
  $region11: #{box_regression_forward.1} parent=0 // pred_check_branch
    %17 = sbr.rel (0) target = $region13
  $region12: #{box_regression_forward.1} parent=0 // pred_region
    _
  $region13: #{box_regression_forward.1} parent=0 // pred_fallthru
    _
  // Predicated region
  $region14: #{box_regression_forward.1} parent=0 // pred_check
    _
  $region15: #{box_regression_forward.1} parent=0 // pred_check_branch
    %19 = sbr.rel (0) target = $region17
  $region16: #{box_regression_forward.1} parent=0 // pred_region
    _
  $region17: #{box_regression_forward.1} parent=0 // pred_fallthru
    _
  // Predicated region
  $region18: #{box_regression_forward.1} parent=0 // pred_check
    _
  $region19: #{box_regression_forward.1} parent=0 // pred_check_branch
    %21 = sbr.rel (0) target = $region21
  $region20: #{box_regression_forward.1} parent=0 // pred_region
    _
  $region21: #{box_regression_forward.1} parent=0 // pred_fallthru
    _
  // Predicated region
  $region22: #{box_regression_forward.1} parent=0 // pred_check
    _
  $region23: #{box_regression_forward.1} parent=0 // pred_check_branch
    %23 = sbr.rel (0) target = $region25
  $region24: #{box_regression_forward.1} parent=0 // pred_region
    _
  $region25: #{box_regression_forward.1} parent=0 // pred_fallthru
    _
  // Predicated region
  $region26: #{box_regression_forward.1} parent=0 // pred_check
    _
  $region27: #{box_regression_forward.1} parent=0 // pred_check_branch
    %25 = sbr.rel (0) target = $region29
  $region28: #{box_regression_forward.1} parent=0 // pred_region
    _
  $region29: #{box_regression_forward.1} parent=0 // pred_fallthru
    _
  %v27 = vld [vmem:[%s0] sm:$0xff]
  %v28 = vld [vmem:[%s0 + $0x8] sm:$0xff]
  %v29 = vld [vmem:[%s0 + $0x10] sm:$0xff]
  %v30 = vld [vmem:[%s0 + $0x18] sm:$0xff]
  %v31 = vld [vmem:[%s1] sm:$0xff]
  %v32 = vld [vmem:[%s1 + $0x8] sm:$0xff]
  %v33 = vld [vmem:[%s1 + $0x10] sm:$0xff]
  %v34 = vld [vmem:[%s1 + $0x18] sm:$0xff]
  %v35 = vld [vmem:[%s1 + $0x20] sm:$0xff]
  %v36 = vld [vmem:[%s1 + $0x28] sm:$0xff]
  %v37 = vld [vmem:[%s1 + $0x30] sm:$0xff]
  %v38 = vld [vmem:[%s1 + $0x38] sm:$0xff]
  %v39 = vld [vmem:[%s1 + $0x40] sm:$0xff]
  %v40 = vld [vmem:[%s1 + $0x48] sm:$0xff]
  %v41 = vld [vmem:[%s1 + $0x50] sm:$0xff]
  %v42 = vld [vmem:[%s1 + $0x58] sm:$0xff]
  %v43 = vld [vmem:[%s1 + $0x60] sm:$0xff]
  %v44 = vld [vmem:[%s1 + $0x68] sm:$0xff]
  %v45 = vld [vmem:[%s1 + $0x70] sm:$0xff]
  %v46 = vld [vmem:[%s1 + $0x78] sm:$0xff]
  %v47 = vld [vmem:[%s1 + $0x80] sm:$0xff]
  %v48 = vld [vmem:[%s1 + $0x88] sm:$0xff]
  %v49 = vld [vmem:[%s1 + $0x90] sm:$0xff]
  %v50 = vld [vmem:[%s1 + $0x98] sm:$0xff]
  %v51 = vld [vmem:[%s1 + $0xa0] sm:$0xff]
  %v52 = vld [vmem:[%s1 + $0xa8] sm:$0xff]
  %v53 = vld [vmem:[%s1 + $0xb0] sm:$0xff]
  %v54 = vld [vmem:[%s1 + $0xb8] sm:$0xff]
  %v55 = vld [vmem:[%s1 + $0xc0] sm:$0xff]
  %v56 = vld [vmem:[%s1 + $0xc8] sm:$0xff]
  %v57 = vld [vmem:[%s1 + $0xd0] sm:$0xff]
  %v58 = vld [vmem:[%s1 + $0xd8] sm:$0xff]
  %v59 = vld [vmem:[%s1 + $0xe0] sm:$0xff]
  %v60 = vld [vmem:[%s1 + $0xe8] sm:$0xff]
  %v61 = vld [vmem:[%s1 + $0xf0] sm:$0xff]
  %v62 = vld [vmem:[%s1 + $0xf8] sm:$0xff]
  %v63 = vld [vmem:[%s1 + $0x100] sm:$0xff]
  %v64 = vld [vmem:[%s1 + $0x108] sm:$0xff]
  %v65 = vld [vmem:[%s1 + $0x110] sm:$0xff]
  %v66 = vld [vmem:[%s1 + $0x118] sm:$0xff]
  %v67 = vld [vmem:[%s1 + $0x120] sm:$0xff]
  %v68 = vld [vmem:[%s1 + $0x128] sm:$0xff]
  %v69 = vld [vmem:[%s1 + $0x130] sm:$0xff]
  %v70 = vld [vmem:[%s1 + $0x138] sm:$0xff]
  %v71 = vld [vmem:[%s1 + $0x140] sm:$0xff]
  %v72 = vld [vmem:[%s1 + $0x148] sm:$0xff]
  %v73 = vld [vmem:[%s1 + $0x150] sm:$0xff]
  %v74 = vld [vmem:[%s1 + $0x158] sm:$0xff]
  %v75 = vld [vmem:[%s1 + $0x160] sm:$0xff]
  %v76 = vld [vmem:[%s1 + $0x168] sm:$0xff]
  %v77 = vld [vmem:[%s1 + $0x170] sm:$0xff]
  %v78 = vld [vmem:[%s1 + $0x178] sm:$0xff]
  %v79 = vld [vmem:[%s1 + $0x180] sm:$0xff]
  %v80 = vld [vmem:[%s1 + $0x188] sm:$0xff]
  %v81 = vld [vmem:[%s1 + $0x190] sm:$0xff]
  %v82 = vld [vmem:[%s1 + $0x198] sm:$0xff]
  %v83 = vld [vmem:[%s1 + $0x1a0] sm:$0xff]
  %v84 = vld [vmem:[%s1 + $0x1a8] sm:$0xff]
  %v85 = vld [vmem:[%s1 + $0x1b0] sm:$0xff]
  %v86 = vld [vmem:[%s1 + $0x1b8] sm:$0xff]
  %v87 = vld [vmem:[%s1 + $0x1c0] sm:$0xff]
  %v88 = vld [vmem:[%s1 + $0x1c8] sm:$0xff]
  %v89 = vld [vmem:[%s1 + $0x1d0] sm:$0xff]
  %v90 = vld [vmem:[%s1 + $0x1d8] sm:$0xff]
  %v91 = vld [vmem:[%s1 + $0x1e0] sm:$0xff]
  %v92 = vld [vmem:[%s1 + $0x1e8] sm:$0xff]
  %v93 = vld [vmem:[%s1 + $0x1f0] sm:$0xff]
  %v94 = vld [vmem:[%s1 + $0x1f8] sm:$0xff]
  %v95 = vld [vmem:[%s1 + $0x200] sm:$0xff]
  %v96 = vld [vmem:[%s1 + $0x208] sm:$0xff]
  %v97 = vld [vmem:[%s1 + $0x210] sm:$0xff]
  %v98 = vld [vmem:[%s1 + $0x218] sm:$0xff]
  %v99 = vld [vmem:[%s1 + $0x220] sm:$0xff]
  %v100 = vld [vmem:[%s1 + $0x228] sm:$0xff]
  %v101 = vld [vmem:[%s1 + $0x230] sm:$0xff]
  %v102 = vld [vmem:[%s1 + $0x238] sm:$0xff]
  %v103 = vld [vmem:[%s1 + $0x240] sm:$0xff]
  %v104 = vld [vmem:[%s1 + $0x248] sm:$0xff]
  %v105 = vld [vmem:[%s1 + $0x250] sm:$0xff]
  %v106 = vld [vmem:[%s1 + $0x258] sm:$0xff]
  %v107 = vld [vmem:[%s1 + $0x260] sm:$0xff]
  %v108 = vld [vmem:[%s1 + $0x268] sm:$0xff]
  %v109 = vld [vmem:[%s1 + $0x270] sm:$0xff]
  %v110 = vld [vmem:[%s1 + $0x278] sm:$0xff]
  %v111 = vld [vmem:[%s1 + $0x280] sm:$0xff]
  %v112 = vld [vmem:[%s1 + $0x288] sm:$0xff]
  %v113 = vld [vmem:[%s1 + $0x290] sm:$0xff]
  %v114 = vld [vmem:[%s1 + $0x298] sm:$0xff]
  %v115 = vld [vmem:[%s1 + $0x2a0] sm:$0xff]
  %v116 = vld [vmem:[%s1 + $0x2a8] sm:$0xff]
  %v117 = vld [vmem:[%s1 + $0x2b0] sm:$0xff]
  %v118 = vld [vmem:[%s1 + $0x2b8] sm:$0xff]
  %v119 = vld [vmem:[%s1 + $0x2c0] sm:$0xff]
  %v120 = vld [vmem:[%s1 + $0x2c8] sm:$0xff]
  %v121 = vld [vmem:[%s1 + $0x2d0] sm:$0xff]
  %v122 = vld [vmem:[%s1 + $0x2d8] sm:$0xff]
  %v123 = vld [vmem:[%s1 + $0x2e0] sm:$0xff]
  %v124 = vld [vmem:[%s1 + $0x2e8] sm:$0xff]
  %v125 = vld [vmem:[%s1 + $0x2f0] sm:$0xff]
  %v126 = vld [vmem:[%s1 + $0x2f8] sm:$0xff]
  %v127 = vld [vmem:[%s1 + $0x300] sm:$0xff]
  %v128 = vld [vmem:[%s1 + $0x308] sm:$0xff]
  %v129 = vld [vmem:[%s1 + $0x310] sm:$0xff]
  %v130 = vld [vmem:[%s1 + $0x318] sm:$0xff]
  %v131 = vld [vmem:[%s1 + $0x320] sm:$0xff]
  %v132 = vld [vmem:[%s1 + $0x328] sm:$0xff]
  %v133 = vld [vmem:[%s1 + $0x330] sm:$0xff]
  %v134 = vld [vmem:[%s1 + $0x338] sm:$0xff]
  %v135 = vld [vmem:[%s1 + $0x340] sm:$0xff]
  %v136 = vld [vmem:[%s1 + $0x348] sm:$0xff]
  %v137 = vld [vmem:[%s1 + $0x350] sm:$0xff]
  %v138 = vld [vmem:[%s1 + $0x358] sm:$0xff]
  %v139 = vld [vmem:[%s1 + $0x360] sm:$0xff]
  %v140 = vld [vmem:[%s1 + $0x368] sm:$0xff]
  %v141 = vld [vmem:[%s1 + $0x370] sm:$0xff]
  %v142 = vld [vmem:[%s1 + $0x378] sm:$0xff]
  %v143 = vld [vmem:[%s1 + $0x380] sm:$0xff]
  %v144 = vld [vmem:[%s1 + $0x388] sm:$0xff]
  %v145 = vld [vmem:[%s1 + $0x390] sm:$0xff]
  %v146 = vld [vmem:[%s1 + $0x398] sm:$0xff]
  %v147 = vld [vmem:[%s1 + $0x3a0] sm:$0xff]
  %v148 = vld [vmem:[%s1 + $0x3a8] sm:$0xff]
  %v149 = vld [vmem:[%s1 + $0x3b0] sm:$0xff]
  %v150 = vld [vmem:[%s1 + $0x3b8] sm:$0xff]
  %v151 = vld [vmem:[%s1 + $0x3c0] sm:$0xff]
  %v152 = vld [vmem:[%s1 + $0x3c8] sm:$0xff]
  %v153 = vld [vmem:[%s1 + $0x3d0] sm:$0xff]
  %v154 = vld [vmem:[%s1 + $0x3d8] sm:$0xff]
  %v155 = vld [vmem:[%s1 + $0x3e0] sm:$0xff]
  %v156 = vld [vmem:[%s1 + $0x3e8] sm:$0xff]
  %v157 = vld [vmem:[%s1 + $0x3f0] sm:$0xff]
  %v158 = vld [vmem:[%s1 + $0x3f8] sm:$0xff]
  %v159 = vld [vmem:[%s2] sm:$0x3]
  %v161 = vlaneseq
  %v162 = vshrl.u32 %v161, 7
  %v163 = vsub.s32 0, %v162
  %v164 = vrot.slane %v159, %v163
  %v165 = vlaneseq
  %v166 = vshrl.u32 %v165, 7
  %v167 = vsub.s32 1, %v166
  %v168 = vrot.slane %v159, %v167
  %v175 = vunpack.c.l.b16 %v27
  %v176 = vunpack.c.h.b16 %v27
  %v177 = vunpack.c.l.b16 %v28
  %v178 = vunpack.c.h.b16 %v28
  %v179 = vunpack.c.l.b16 %v29
  %v180 = vunpack.c.h.b16 %v29
  %v181 = vunpack.c.l.b16 %v30
  %v182 = vunpack.c.h.b16 %v30
  %v183 = vpack.c.b16 %v175, %v175
  %v184 = vpack.c.b16 %v176, %v176
  %v185 = vpack.c.b16 %v177, %v177
  %v186 = vpack.c.b16 %v178, %v178
  %v187 = vpack.c.b16 %v179, %v179
  %v188 = vpack.c.b16 %v180, %v180
  %v189 = vpack.c.b16 %v181, %v181
  %v190 = vpack.c.b16 %v182, %v182
  %v327 = vunpack.c.l.b16 %v31
  %v328 = vunpack.c.h.b16 %v31
  %v329 = vunpack.c.l.b16 %v32
  %v330 = vunpack.c.h.b16 %v32
  %v331 = vunpack.c.l.b16 %v33
  %v332 = vunpack.c.h.b16 %v33
  %v333 = vunpack.c.l.b16 %v34
  %v334 = vunpack.c.h.b16 %v34
  %v335 = vunpack.c.l.b16 %v35
  %v336 = vunpack.c.h.b16 %v35
  %v337 = vunpack.c.l.b16 %v36
  %v338 = vunpack.c.h.b16 %v36
  %v339 = vunpack.c.l.b16 %v37
  %v340 = vunpack.c.h.b16 %v37
  %v341 = vunpack.c.l.b16 %v38
  %v342 = vunpack.c.h.b16 %v38
  %v343 = vunpack.c.l.b16 %v39
  %v344 = vunpack.c.h.b16 %v39
  %v345 = vunpack.c.l.b16 %v40
  %v346 = vunpack.c.h.b16 %v40
  %v347 = vunpack.c.l.b16 %v41
  %v348 = vunpack.c.h.b16 %v41
  %v349 = vunpack.c.l.b16 %v42
  %v350 = vunpack.c.h.b16 %v42
  %v351 = vunpack.c.l.b16 %v43
  %v352 = vunpack.c.h.b16 %v43
  %v353 = vunpack.c.l.b16 %v44
  %v354 = vunpack.c.h.b16 %v44
  %v355 = vunpack.c.l.b16 %v45
  %v356 = vunpack.c.h.b16 %v45
  %v357 = vunpack.c.l.b16 %v46
  %v358 = vunpack.c.h.b16 %v46
  %v359 = vunpack.c.l.b16 %v47
  %v360 = vunpack.c.h.b16 %v47
  %v361 = vunpack.c.l.b16 %v48
  %v362 = vunpack.c.h.b16 %v48
  %v363 = vunpack.c.l.b16 %v49
  %v364 = vunpack.c.h.b16 %v49
  %v365 = vunpack.c.l.b16 %v50
  %v366 = vunpack.c.h.b16 %v50
  %v367 = vunpack.c.l.b16 %v51
  %v368 = vunpack.c.h.b16 %v51
  %v369 = vunpack.c.l.b16 %v52
  %v370 = vunpack.c.h.b16 %v52
  %v371 = vunpack.c.l.b16 %v53
  %v372 = vunpack.c.h.b16 %v53
  %v373 = vunpack.c.l.b16 %v54
  %v374 = vunpack.c.h.b16 %v54
  %v375 = vunpack.c.l.b16 %v55
  %v376 = vunpack.c.h.b16 %v55
  %v377 = vunpack.c.l.b16 %v56
  %v378 = vunpack.c.h.b16 %v56
  %v379 = vunpack.c.l.b16 %v57
  %v380 = vunpack.c.h.b16 %v57
  %v381 = vunpack.c.l.b16 %v58
  %v382 = vunpack.c.h.b16 %v58
  %v383 = vunpack.c.l.b16 %v59
  %v384 = vunpack.c.h.b16 %v59
  %v385 = vunpack.c.l.b16 %v60
  %v386 = vunpack.c.h.b16 %v60
  %v387 = vunpack.c.l.b16 %v61
  %v388 = vunpack.c.h.b16 %v61
  %v389 = vunpack.c.l.b16 %v62
  %v390 = vunpack.c.h.b16 %v62
  %v391 = vunpack.c.l.b16 %v63
  %v392 = vunpack.c.h.b16 %v63
  %v393 = vunpack.c.l.b16 %v64
  %v394 = vunpack.c.h.b16 %v64
  %v395 = vunpack.c.l.b16 %v65
  %v396 = vunpack.c.h.b16 %v65
  %v397 = vunpack.c.l.b16 %v66
  %v398 = vunpack.c.h.b16 %v66
  %v399 = vunpack.c.l.b16 %v67
  %v400 = vunpack.c.h.b16 %v67
  %v401 = vunpack.c.l.b16 %v68
  %v402 = vunpack.c.h.b16 %v68
  %v403 = vunpack.c.l.b16 %v69
  %v404 = vunpack.c.h.b16 %v69
  %v405 = vunpack.c.l.b16 %v70
  %v406 = vunpack.c.h.b16 %v70
  %v407 = vunpack.c.l.b16 %v71
  %v408 = vunpack.c.h.b16 %v71
  %v409 = vunpack.c.l.b16 %v72
  %v410 = vunpack.c.h.b16 %v72
  %v411 = vunpack.c.l.b16 %v73
  %v412 = vunpack.c.h.b16 %v73
  %v413 = vunpack.c.l.b16 %v74
  %v414 = vunpack.c.h.b16 %v74
  %v415 = vunpack.c.l.b16 %v75
  %v416 = vunpack.c.h.b16 %v75
  %v417 = vunpack.c.l.b16 %v76
  %v418 = vunpack.c.h.b16 %v76
  %v419 = vunpack.c.l.b16 %v77
  %v420 = vunpack.c.h.b16 %v77
  %v421 = vunpack.c.l.b16 %v78
  %v422 = vunpack.c.h.b16 %v78
  %v423 = vunpack.c.l.b16 %v79
  %v424 = vunpack.c.h.b16 %v79
  %v425 = vunpack.c.l.b16 %v80
  %v426 = vunpack.c.h.b16 %v80
  %v427 = vunpack.c.l.b16 %v81
  %v428 = vunpack.c.h.b16 %v81
  %v429 = vunpack.c.l.b16 %v82
  %v430 = vunpack.c.h.b16 %v82
  %v431 = vunpack.c.l.b16 %v83
  %v432 = vunpack.c.h.b16 %v83
  %v433 = vunpack.c.l.b16 %v84
  %v434 = vunpack.c.h.b16 %v84
  %v435 = vunpack.c.l.b16 %v85
  %v436 = vunpack.c.h.b16 %v85
  %v437 = vunpack.c.l.b16 %v86
  %v438 = vunpack.c.h.b16 %v86
  %v439 = vunpack.c.l.b16 %v87
  %v440 = vunpack.c.h.b16 %v87
  %v441 = vunpack.c.l.b16 %v88
  %v442 = vunpack.c.h.b16 %v88
  %v443 = vunpack.c.l.b16 %v89
  %v444 = vunpack.c.h.b16 %v89
  %v445 = vunpack.c.l.b16 %v90
  %v446 = vunpack.c.h.b16 %v90
  %v447 = vunpack.c.l.b16 %v91
  %v448 = vunpack.c.h.b16 %v91
  %v449 = vunpack.c.l.b16 %v92
  %v450 = vunpack.c.h.b16 %v92
  %v451 = vunpack.c.l.b16 %v93
  %v452 = vunpack.c.h.b16 %v93
  %v453 = vunpack.c.l.b16 %v94
  %v454 = vunpack.c.h.b16 %v94
  %v455 = vunpack.c.l.b16 %v95
  %v456 = vunpack.c.h.b16 %v95
  %v457 = vunpack.c.l.b16 %v96
  %v458 = vunpack.c.h.b16 %v96
  %v459 = vunpack.c.l.b16 %v97
  %v460 = vunpack.c.h.b16 %v97
  %v461 = vunpack.c.l.b16 %v98
  %v462 = vunpack.c.h.b16 %v98
  %v463 = vunpack.c.l.b16 %v99
  %v464 = vunpack.c.h.b16 %v99
  %v465 = vunpack.c.l.b16 %v100
  %v466 = vunpack.c.h.b16 %v100
  %v467 = vunpack.c.l.b16 %v101
  %v468 = vunpack.c.h.b16 %v101
  %v469 = vunpack.c.l.b16 %v102
  %v470 = vunpack.c.h.b16 %v102
  %v471 = vunpack.c.l.b16 %v103
  %v472 = vunpack.c.h.b16 %v103
  %v473 = vunpack.c.l.b16 %v104
  %v474 = vunpack.c.h.b16 %v104
  %v475 = vunpack.c.l.b16 %v105
  %v476 = vunpack.c.h.b16 %v105
  %v477 = vunpack.c.l.b16 %v106
  %v478 = vunpack.c.h.b16 %v106
  %v479 = vunpack.c.l.b16 %v107
  %v480 = vunpack.c.h.b16 %v107
  %v481 = vunpack.c.l.b16 %v108
  %v482 = vunpack.c.h.b16 %v108
  %v483 = vunpack.c.l.b16 %v109
  %v484 = vunpack.c.h.b16 %v109
  %v485 = vunpack.c.l.b16 %v110
  %v486 = vunpack.c.h.b16 %v110
  %v487 = vunpack.c.l.b16 %v111
  %v488 = vunpack.c.h.b16 %v111
  %v489 = vunpack.c.l.b16 %v112
  %v490 = vunpack.c.h.b16 %v112
  %v491 = vunpack.c.l.b16 %v113
  %v492 = vunpack.c.h.b16 %v113
  %v493 = vunpack.c.l.b16 %v114
  %v494 = vunpack.c.h.b16 %v114
  %v495 = vunpack.c.l.b16 %v115
  %v496 = vunpack.c.h.b16 %v115
  %v497 = vunpack.c.l.b16 %v116
  %v498 = vunpack.c.h.b16 %v116
  %v499 = vunpack.c.l.b16 %v117
  %v500 = vunpack.c.h.b16 %v117
  %v501 = vunpack.c.l.b16 %v118
  %v502 = vunpack.c.h.b16 %v118
  %v503 = vunpack.c.l.b16 %v119
  %v504 = vunpack.c.h.b16 %v119
  %v505 = vunpack.c.l.b16 %v120
  %v506 = vunpack.c.h.b16 %v120
  %v507 = vunpack.c.l.b16 %v121
  %v508 = vunpack.c.h.b16 %v121
  %v509 = vunpack.c.l.b16 %v122
  %v510 = vunpack.c.h.b16 %v122
  %v511 = vunpack.c.l.b16 %v123
  %v512 = vunpack.c.h.b16 %v123
  %v513 = vunpack.c.l.b16 %v124
  %v514 = vunpack.c.h.b16 %v124
  %v515 = vunpack.c.l.b16 %v125
  %v516 = vunpack.c.h.b16 %v125
  %v517 = vunpack.c.l.b16 %v126
  %v518 = vunpack.c.h.b16 %v126
  %v519 = vunpack.c.l.b16 %v127
  %v520 = vunpack.c.h.b16 %v127
  %v521 = vunpack.c.l.b16 %v128
  %v522 = vunpack.c.h.b16 %v128
  %v523 = vunpack.c.l.b16 %v129
  %v524 = vunpack.c.h.b16 %v129
  %v525 = vunpack.c.l.b16 %v130
  %v526 = vunpack.c.h.b16 %v130
  %v527 = vunpack.c.l.b16 %v131
  %v528 = vunpack.c.h.b16 %v131
  %v529 = vunpack.c.l.b16 %v132
  %v530 = vunpack.c.h.b16 %v132
  %v531 = vunpack.c.l.b16 %v133
  %v532 = vunpack.c.h.b16 %v133
  %v533 = vunpack.c.l.b16 %v134
  %v534 = vunpack.c.h.b16 %v134
  %v535 = vunpack.c.l.b16 %v135
  %v536 = vunpack.c.h.b16 %v135
  %v537 = vunpack.c.l.b16 %v136
  %v538 = vunpack.c.h.b16 %v136
  %v539 = vunpack.c.l.b16 %v137
  %v540 = vunpack.c.h.b16 %v137
  %v541 = vunpack.c.l.b16 %v138
  %v542 = vunpack.c.h.b16 %v138
  %v543 = vunpack.c.l.b16 %v139
  %v544 = vunpack.c.h.b16 %v139
  %v545 = vunpack.c.l.b16 %v140
  %v546 = vunpack.c.h.b16 %v140
  %v547 = vunpack.c.l.b16 %v141
  %v548 = vunpack.c.h.b16 %v141
  %v549 = vunpack.c.l.b16 %v142
  %v550 = vunpack.c.h.b16 %v142
  %v551 = vunpack.c.l.b16 %v143
  %v552 = vunpack.c.h.b16 %v143
  %v553 = vunpack.c.l.b16 %v144
  %v554 = vunpack.c.h.b16 %v144
  %v555 = vunpack.c.l.b16 %v145
  %v556 = vunpack.c.h.b16 %v145
  %v557 = vunpack.c.l.b16 %v146
  %v558 = vunpack.c.h.b16 %v146
  %v559 = vunpack.c.l.b16 %v147
  %v560 = vunpack.c.h.b16 %v147
  %v561 = vunpack.c.l.b16 %v148
  %v562 = vunpack.c.h.b16 %v148
  %v563 = vunpack.c.l.b16 %v149
  %v564 = vunpack.c.h.b16 %v149
  %v565 = vunpack.c.l.b16 %v150
  %v566 = vunpack.c.h.b16 %v150
  %v567 = vunpack.c.l.b16 %v151
  %v568 = vunpack.c.h.b16 %v151
  %v569 = vunpack.c.l.b16 %v152
  %v570 = vunpack.c.h.b16 %v152
  %v571 = vunpack.c.l.b16 %v153
  %v572 = vunpack.c.h.b16 %v153
  %v573 = vunpack.c.l.b16 %v154
  %v574 = vunpack.c.h.b16 %v154
  %v575 = vunpack.c.l.b16 %v155
  %v576 = vunpack.c.h.b16 %v155
  %v577 = vunpack.c.l.b16 %v156
  %v578 = vunpack.c.h.b16 %v156
  %v579 = vunpack.c.l.b16 %v157
  %v580 = vunpack.c.h.b16 %v157
  %v581 = vunpack.c.l.b16 %v158
  %v582 = vunpack.c.h.b16 %v158
  %v583 = vpack.c.b16 %v329, %v327
  %v584 = vpack.c.b16 %v330, %v328
  %v585 = vpack.c.b16 %v333, %v331
  %v586 = vpack.c.b16 %v334, %v332
  %v587 = vpack.c.b16 %v337, %v335
  %v588 = vpack.c.b16 %v338, %v336
  %v589 = vpack.c.b16 %v341, %v339
  %v590 = vpack.c.b16 %v342, %v340
  %v591 = vpack.c.b16 %v345, %v343
  %v592 = vpack.c.b16 %v346, %v344
  %v593 = vpack.c.b16 %v349, %v347
  %v594 = vpack.c.b16 %v350, %v348
  %v595 = vpack.c.b16 %v353, %v351
  %v596 = vpack.c.b16 %v354, %v352
  %v597 = vpack.c.b16 %v357, %v355
  %v598 = vpack.c.b16 %v358, %v356
  %v599 = vpack.c.b16 %v361, %v359
  %v600 = vpack.c.b16 %v362, %v360
  %v601 = vpack.c.b16 %v365, %v363
  %v602 = vpack.c.b16 %v366, %v364
  %v603 = vpack.c.b16 %v369, %v367
  %v604 = vpack.c.b16 %v370, %v368
  %v605 = vpack.c.b16 %v373, %v371
  %v606 = vpack.c.b16 %v374, %v372
  %v607 = vpack.c.b16 %v377, %v375
  %v608 = vpack.c.b16 %v378, %v376
  %v609 = vpack.c.b16 %v381, %v379
  %v610 = vpack.c.b16 %v382, %v380
  %v611 = vpack.c.b16 %v385, %v383
  %v612 = vpack.c.b16 %v386, %v384
  %v613 = vpack.c.b16 %v389, %v387
  %v614 = vpack.c.b16 %v390, %v388
  %v615 = vpack.c.b16 %v393, %v391
  %v616 = vpack.c.b16 %v394, %v392
  %v617 = vpack.c.b16 %v397, %v395
  %v618 = vpack.c.b16 %v398, %v396
  %v619 = vpack.c.b16 %v401, %v399
  %v620 = vpack.c.b16 %v402, %v400
  %v621 = vpack.c.b16 %v405, %v403
  %v622 = vpack.c.b16 %v406, %v404
  %v623 = vpack.c.b16 %v409, %v407
  %v624 = vpack.c.b16 %v410, %v408
  %v625 = vpack.c.b16 %v413, %v411
  %v626 = vpack.c.b16 %v414, %v412
  %v627 = vpack.c.b16 %v417, %v415
  %v628 = vpack.c.b16 %v418, %v416
  %v629 = vpack.c.b16 %v421, %v419
  %v630 = vpack.c.b16 %v422, %v420
  %v631 = vpack.c.b16 %v425, %v423
  %v632 = vpack.c.b16 %v426, %v424
  %v633 = vpack.c.b16 %v429, %v427
  %v634 = vpack.c.b16 %v430, %v428
  %v635 = vpack.c.b16 %v433, %v431
  %v636 = vpack.c.b16 %v434, %v432
  %v637 = vpack.c.b16 %v437, %v435
  %v638 = vpack.c.b16 %v438, %v436
  %v639 = vpack.c.b16 %v441, %v439
  %v640 = vpack.c.b16 %v442, %v440
  %v641 = vpack.c.b16 %v445, %v443
  %v642 = vpack.c.b16 %v446, %v444
  %v643 = vpack.c.b16 %v449, %v447
  %v644 = vpack.c.b16 %v450, %v448
  %v645 = vpack.c.b16 %v453, %v451
  %v646 = vpack.c.b16 %v454, %v452
  %v647 = vpack.c.b16 %v457, %v455
  %v648 = vpack.c.b16 %v458, %v456
  %v649 = vpack.c.b16 %v461, %v459
  %v650 = vpack.c.b16 %v462, %v460
  %v651 = vpack.c.b16 %v465, %v463
  %v652 = vpack.c.b16 %v466, %v464
  %v653 = vpack.c.b16 %v469, %v467
  %v654 = vpack.c.b16 %v470, %v468
  %v655 = vpack.c.b16 %v473, %v471
  %v656 = vpack.c.b16 %v474, %v472
  %v657 = vpack.c.b16 %v477, %v475
  %v658 = vpack.c.b16 %v478, %v476
  %v659 = vpack.c.b16 %v481, %v479
  %v660 = vpack.c.b16 %v482, %v480
  %v661 = vpack.c.b16 %v485, %v483
  %v662 = vpack.c.b16 %v486, %v484
  %v663 = vpack.c.b16 %v489, %v487
  %v664 = vpack.c.b16 %v490, %v488
  %v665 = vpack.c.b16 %v493, %v491
  %v666 = vpack.c.b16 %v494, %v492
  %v667 = vpack.c.b16 %v497, %v495
  %v668 = vpack.c.b16 %v498, %v496
  %v669 = vpack.c.b16 %v501, %v499
  %v670 = vpack.c.b16 %v502, %v500
  %v671 = vpack.c.b16 %v505, %v503
  %v672 = vpack.c.b16 %v506, %v504
  %v673 = vpack.c.b16 %v509, %v507
  %v674 = vpack.c.b16 %v510, %v508
  %v675 = vpack.c.b16 %v513, %v511
  %v676 = vpack.c.b16 %v514, %v512
  %v677 = vpack.c.b16 %v517, %v515
  %v678 = vpack.c.b16 %v518, %v516
  %v679 = vpack.c.b16 %v521, %v519
  %v680 = vpack.c.b16 %v522, %v520
  %v681 = vpack.c.b16 %v525, %v523
  %v682 = vpack.c.b16 %v526, %v524
  %v683 = vpack.c.b16 %v529, %v527
  %v684 = vpack.c.b16 %v530, %v528
  %v685 = vpack.c.b16 %v533, %v531
  %v686 = vpack.c.b16 %v534, %v532
  %v687 = vpack.c.b16 %v537, %v535
  %v688 = vpack.c.b16 %v538, %v536
  %v689 = vpack.c.b16 %v541, %v539
  %v690 = vpack.c.b16 %v542, %v540
  %v691 = vpack.c.b16 %v545, %v543
  %v692 = vpack.c.b16 %v546, %v544
  %v693 = vpack.c.b16 %v549, %v547
  %v694 = vpack.c.b16 %v550, %v548
  %v695 = vpack.c.b16 %v553, %v551
  %v696 = vpack.c.b16 %v554, %v552
  %v697 = vpack.c.b16 %v557, %v555
  %v698 = vpack.c.b16 %v558, %v556
  %v699 = vpack.c.b16 %v561, %v559
  %v700 = vpack.c.b16 %v562, %v560
  %v701 = vpack.c.b16 %v565, %v563
  %v702 = vpack.c.b16 %v566, %v564
  %v703 = vpack.c.b16 %v569, %v567
  %v704 = vpack.c.b16 %v570, %v568
  %v705 = vpack.c.b16 %v573, %v571
  %v706 = vpack.c.b16 %v574, %v572
  %v707 = vpack.c.b16 %v577, %v575
  %v708 = vpack.c.b16 %v578, %v576
  %v709 = vpack.c.b16 %v581, %v579
  %v710 = vpack.c.b16 %v582, %v580
  %839 = vmatprep.subr.bf16.mxu0 %v584
  %840 = vmatpush1.bf16.msra.mxu0 %v583
  %841 = vmatprep.subr.bf16.mxu0 %v586
  %842 = vmatpush1.bf16.msra.mxu0 %v585
  %843 = vmatprep.subr.bf16.mxu0 %v588
  %844 = vmatpush1.bf16.msra.mxu0 %v587
  %845 = vmatprep.subr.bf16.mxu0 %v590
  %846 = vmatpush1.bf16.msra.mxu0 %v589
  %847 = vmatprep.subr.bf16.mxu0 %v592
  %848 = vmatpush1.bf16.msra.mxu0 %v591
  %849 = vmatprep.subr.bf16.mxu0 %v594
  %850 = vmatpush1.bf16.msra.mxu0 %v593
  %851 = vmatprep.subr.bf16.mxu0 %v596
  %852 = vmatpush1.bf16.msra.mxu0 %v595
  %853 = vmatprep.subr.bf16.mxu0 %v598
  %854 = vmatpush1.bf16.msra.mxu0 %v597
  %855 = vmatprep.subr.bf16.mxu0 %v600
  %856 = vmatpush1.bf16.msra.mxu0 %v599
  %857 = vmatprep.subr.bf16.mxu0 %v602
  %858 = vmatpush1.bf16.msra.mxu0 %v601
  %859 = vmatprep.subr.bf16.mxu0 %v604
  %860 = vmatpush1.bf16.msra.mxu0 %v603
  %861 = vmatprep.subr.bf16.mxu0 %v606
  %862 = vmatpush1.bf16.msra.mxu0 %v605
  %863 = vmatprep.subr.bf16.mxu0 %v608
  %864 = vmatpush1.bf16.msra.mxu0 %v607
  %865 = vmatprep.subr.bf16.mxu0 %v610
  %866 = vmatpush1.bf16.msra.mxu0 %v609
  %867 = vmatprep.subr.bf16.mxu0 %v612
  %868 = vmatpush1.bf16.msra.mxu0 %v611
  %869 = vmatprep.subr.bf16.mxu0 %v614
  %870 = vmatpush1.bf16.msra.mxu0 %v613
  %871 = vmatprep.mubr.bf16.mxu0 %v184
  %872 = vmatmul.mubr.bf16.gmra.mrb[0].mxu0 %v183
  %v873 = vpop.f32.mrb[0].mxu0
  %v874 = vadd.f32 %v164, %v873
  %v875 = vpop.f32.mrb[0].mxu0
  %v876 = vadd.f32 %v168, %v875
  %v877 = vpop.f32.mrb[0].mxu0
  %v878 = vpop.f32.mrb[0].mxu0
  %879 = vdwg.mxu0
  %880 = vmatprep.subr.bf16.mxu0 %v616
  %881 = vmatpush1.bf16.msra.mxu0 %v615
  %882 = vmatprep.subr.bf16.mxu0 %v618
  %883 = vmatpush1.bf16.msra.mxu0 %v617
  %884 = vmatprep.subr.bf16.mxu0 %v620
  %885 = vmatpush1.bf16.msra.mxu0 %v619
  %886 = vmatprep.subr.bf16.mxu0 %v622
  %887 = vmatpush1.bf16.msra.mxu0 %v621
  %888 = vmatprep.subr.bf16.mxu0 %v624
  %889 = vmatpush1.bf16.msra.mxu0 %v623
  %890 = vmatprep.subr.bf16.mxu0 %v626
  %891 = vmatpush1.bf16.msra.mxu0 %v625
  %892 = vmatprep.subr.bf16.mxu0 %v628
  %893 = vmatpush1.bf16.msra.mxu0 %v627
  %894 = vmatprep.subr.bf16.mxu0 %v630
  %895 = vmatpush1.bf16.msra.mxu0 %v629
  %896 = vmatprep.subr.bf16.mxu0 %v632
  %897 = vmatpush1.bf16.msra.mxu0 %v631
  %898 = vmatprep.subr.bf16.mxu0 %v634
  %899 = vmatpush1.bf16.msra.mxu0 %v633
  %900 = vmatprep.subr.bf16.mxu0 %v636
  %901 = vmatpush1.bf16.msra.mxu0 %v635
  %902 = vmatprep.subr.bf16.mxu0 %v638
  %903 = vmatpush1.bf16.msra.mxu0 %v637
  %904 = vmatprep.subr.bf16.mxu0 %v640
  %905 = vmatpush1.bf16.msra.mxu0 %v639
  %906 = vmatprep.subr.bf16.mxu0 %v642
  %907 = vmatpush1.bf16.msra.mxu0 %v641
  %908 = vmatprep.subr.bf16.mxu0 %v644
  %909 = vmatpush1.bf16.msra.mxu0 %v643
  %910 = vmatprep.subr.bf16.mxu0 %v646
  %911 = vmatpush1.bf16.msra.mxu0 %v645
  %912 = vmatprep.mubr.bf16.mxu0 %v186
  %913 = vmatmul.mubr.bf16.gmra.mrb[0].mxu0 %v185
  %v914 = vpop.f32.mrb[0].mxu0
  %v915 = vadd.f32 %v874, %v914
  %v916 = vpop.f32.mrb[0].mxu0
  %v917 = vadd.f32 %v876, %v916
  %v918 = vpop.f32.mrb[0].mxu0
  %v919 = vpop.f32.mrb[0].mxu0
  %920 = vdwg.mxu0
  %921 = vmatprep.subr.bf16.mxu0 %v648
  %922 = vmatpush1.bf16.msra.mxu0 %v647
  %923 = vmatprep.subr.bf16.mxu0 %v650
  %924 = vmatpush1.bf16.msra.mxu0 %v649
  %925 = vmatprep.subr.bf16.mxu0 %v652
  %926 = vmatpush1.bf16.msra.mxu0 %v651
  %927 = vmatprep.subr.bf16.mxu0 %v654
  %928 = vmatpush1.bf16.msra.mxu0 %v653
  %929 = vmatprep.subr.bf16.mxu0 %v656
  %930 = vmatpush1.bf16.msra.mxu0 %v655
  %931 = vmatprep.subr.bf16.mxu0 %v658
  %932 = vmatpush1.bf16.msra.mxu0 %v657
  %933 = vmatprep.subr.bf16.mxu0 %v660
  %934 = vmatpush1.bf16.msra.mxu0 %v659
  %935 = vmatprep.subr.bf16.mxu0 %v662
  %936 = vmatpush1.bf16.msra.mxu0 %v661
  %937 = vmatprep.subr.bf16.mxu0 %v664
  %938 = vmatpush1.bf16.msra.mxu0 %v663
  %939 = vmatprep.subr.bf16.mxu0 %v666
  %940 = vmatpush1.bf16.msra.mxu0 %v665
  %941 = vmatprep.subr.bf16.mxu0 %v668
  %942 = vmatpush1.bf16.msra.mxu0 %v667
  %943 = vmatprep.subr.bf16.mxu0 %v670
  %944 = vmatpush1.bf16.msra.mxu0 %v669
  %945 = vmatprep.subr.bf16.mxu0 %v672
  %946 = vmatpush1.bf16.msra.mxu0 %v671
  %947 = vmatprep.subr.bf16.mxu0 %v674
  %948 = vmatpush1.bf16.msra.mxu0 %v673
  %949 = vmatprep.subr.bf16.mxu0 %v676
  %950 = vmatpush1.bf16.msra.mxu0 %v675
  %951 = vmatprep.subr.bf16.mxu0 %v678
  %952 = vmatpush1.bf16.msra.mxu0 %v677
  %953 = vmatprep.mubr.bf16.mxu0 %v188
  %954 = vmatmul.mubr.bf16.gmra.mrb[0].mxu0 %v187
  %v955 = vpop.f32.mrb[0].mxu0
  %v956 = vadd.f32 %v915, %v955
  %v957 = vpop.f32.mrb[0].mxu0
  %v958 = vadd.f32 %v917, %v957
  %v959 = vpop.f32.mrb[0].mxu0
  %v960 = vpop.f32.mrb[0].mxu0
  %961 = vdwg.mxu0
  %962 = vmatprep.subr.bf16.mxu0 %v680
  %963 = vmatpush1.bf16.msra.mxu0 %v679
  %964 = vmatprep.subr.bf16.mxu0 %v682
  %965 = vmatpush1.bf16.msra.mxu0 %v681
  %966 = vmatprep.subr.bf16.mxu0 %v684
  %967 = vmatpush1.bf16.msra.mxu0 %v683
  %968 = vmatprep.subr.bf16.mxu0 %v686
  %969 = vmatpush1.bf16.msra.mxu0 %v685
  %970 = vmatprep.subr.bf16.mxu0 %v688
  %971 = vmatpush1.bf16.msra.mxu0 %v687
  %972 = vmatprep.subr.bf16.mxu0 %v690
  %973 = vmatpush1.bf16.msra.mxu0 %v689
  %974 = vmatprep.subr.bf16.mxu0 %v692
  %975 = vmatpush1.bf16.msra.mxu0 %v691
  %976 = vmatprep.subr.bf16.mxu0 %v694
  %977 = vmatpush1.bf16.msra.mxu0 %v693
  %978 = vmatprep.subr.bf16.mxu0 %v696
  %979 = vmatpush1.bf16.msra.mxu0 %v695
  %980 = vmatprep.subr.bf16.mxu0 %v698
  %981 = vmatpush1.bf16.msra.mxu0 %v697
  %982 = vmatprep.subr.bf16.mxu0 %v700
  %983 = vmatpush1.bf16.msra.mxu0 %v699
  %984 = vmatprep.subr.bf16.mxu0 %v702
  %985 = vmatpush1.bf16.msra.mxu0 %v701
  %986 = vmatprep.subr.bf16.mxu0 %v704
  %987 = vmatpush1.bf16.msra.mxu0 %v703
  %988 = vmatprep.subr.bf16.mxu0 %v706
  %989 = vmatpush1.bf16.msra.mxu0 %v705
  %990 = vmatprep.subr.bf16.mxu0 %v708
  %991 = vmatpush1.bf16.msra.mxu0 %v707
  %992 = vmatprep.subr.bf16.mxu0 %v710
  %993 = vmatpush1.bf16.msra.mxu0 %v709
  %994 = vmatprep.mubr.bf16.mxu0 %v190
  %995 = vmatmul.mubr.bf16.gmra.mrb[0].mxu0 %v189
  %v996 = vpop.f32.mrb[0].mxu0
  %v997 = vadd.f32 %v956, %v996
  %v998 = vpop.f32.mrb[0].mxu0
  %v999 = vadd.f32 %v958, %v998
  %v1000 = vpop.f32.mrb[0].mxu0
  %v1001 = vpop.f32.mrb[0].mxu0
  %1002 = vdwg.mxu0
  %v1003 = vmax.f32 %v997, 0.0
  %v1004 = vmax.f32 %v999, 0.0
  %v1005 = vpack.c.bf16 %v1003, %v1003
  %v1006 = vpack.c.bf16 %v1004, %v1004
  %v1007 = vld [vmem:[%s3] sm:$0xff]
  %v1008 = vld [vmem:[%s3 + $0x8] sm:$0xff]
  %v1009 = vld [vmem:[%s3 + $0x10] sm:$0xff]
  %v1010 = vld [vmem:[%s3 + $0x18] sm:$0xff]
  %v1011 = vld [vmem:[%s3 + $0x20] sm:$0xff]
  %v1012 = vld [vmem:[%s3 + $0x28] sm:$0xff]
  %v1013 = vld [vmem:[%s3 + $0x30] sm:$0xff]
  %v1014 = vld [vmem:[%s3 + $0x38] sm:$0xff]
  %v1015 = vld [vmem:[%s3 + $0x40] sm:$0xff]
  %v1016 = vld [vmem:[%s3 + $0x48] sm:$0xff]
  %v1017 = vld [vmem:[%s3 + $0x50] sm:$0xff]
  %v1018 = vld [vmem:[%s3 + $0x58] sm:$0xff]
  %v1019 = vld [vmem:[%s3 + $0x60] sm:$0xff]
  %v1020 = vld [vmem:[%s3 + $0x68] sm:$0xff]
  %v1021 = vld [vmem:[%s3 + $0x70] sm:$0xff]
  %v1022 = vld [vmem:[%s3 + $0x78] sm:$0xff]
  %v1023 = vld [vmem:[%s3 + $0x80] sm:$0xff]
  %v1024 = vld [vmem:[%s3 + $0x88] sm:$0xff]
  %v1025 = vld [vmem:[%s3 + $0x90] sm:$0xff]
  %v1026 = vld [vmem:[%s3 + $0x98] sm:$0xff]
  %v1027 = vld [vmem:[%s3 + $0xa0] sm:$0xff]
  %v1028 = vld [vmem:[%s3 + $0xa8] sm:$0xff]
  %v1029 = vld [vmem:[%s3 + $0xb0] sm:$0xff]
  %v1030 = vld [vmem:[%s3 + $0xb8] sm:$0xff]
  %v1031 = vld [vmem:[%s3 + $0xc0] sm:$0xff]
  %v1032 = vld [vmem:[%s3 + $0xc8] sm:$0xff]
  %v1033 = vld [vmem:[%s3 + $0xd0] sm:$0xff]
  %v1034 = vld [vmem:[%s3 + $0xd8] sm:$0xff]
  %v1035 = vld [vmem:[%s3 + $0xe0] sm:$0xff]
  %v1036 = vld [vmem:[%s3 + $0xe8] sm:$0xff]
  %v1037 = vld [vmem:[%s3 + $0xf0] sm:$0xff]
  %v1038 = vld [vmem:[%s3 + $0xf8] sm:$0xff]
  %v1039 = vld [vmem:[%s4] sm:$0x3]
  %v1041 = vlaneseq
  %v1042 = vshrl.u32 %v1041, 7
  %v1043 = vsub.s32 0, %v1042
  %v1044 = vrot.slane %v1039, %v1043
  %v1045 = vlaneseq
  %v1046 = vshrl.u32 %v1045, 7
  %v1047 = vsub.s32 1, %v1046
  %v1048 = vrot.slane %v1039, %v1047
  %v1083 = vunpack.c.l.b16 %v1007
  %v1084 = vunpack.c.h.b16 %v1007
  %v1085 = vunpack.c.l.b16 %v1008
  %v1086 = vunpack.c.h.b16 %v1008
  %v1087 = vunpack.c.l.b16 %v1009
  %v1088 = vunpack.c.h.b16 %v1009
  %v1089 = vunpack.c.l.b16 %v1010
  %v1090 = vunpack.c.h.b16 %v1010
  %v1091 = vunpack.c.l.b16 %v1011
  %v1092 = vunpack.c.h.b16 %v1011
  %v1093 = vunpack.c.l.b16 %v1012
  %v1094 = vunpack.c.h.b16 %v1012
  %v1095 = vunpack.c.l.b16 %v1013
  %v1096 = vunpack.c.h.b16 %v1013
  %v1097 = vunpack.c.l.b16 %v1014
  %v1098 = vunpack.c.h.b16 %v1014
  %v1099 = vunpack.c.l.b16 %v1015
  %v1100 = vunpack.c.h.b16 %v1015
  %v1101 = vunpack.c.l.b16 %v1016
  %v1102 = vunpack.c.h.b16 %v1016
  %v1103 = vunpack.c.l.b16 %v1017
  %v1104 = vunpack.c.h.b16 %v1017
  %v1105 = vunpack.c.l.b16 %v1018
  %v1106 = vunpack.c.h.b16 %v1018
  %v1107 = vunpack.c.l.b16 %v1019
  %v1108 = vunpack.c.h.b16 %v1019
  %v1109 = vunpack.c.l.b16 %v1020
  %v1110 = vunpack.c.h.b16 %v1020
  %v1111 = vunpack.c.l.b16 %v1021
  %v1112 = vunpack.c.h.b16 %v1021
  %v1113 = vunpack.c.l.b16 %v1022
  %v1114 = vunpack.c.h.b16 %v1022
  %v1115 = vunpack.c.l.b16 %v1023
  %v1116 = vunpack.c.h.b16 %v1023
  %v1117 = vunpack.c.l.b16 %v1024
  %v1118 = vunpack.c.h.b16 %v1024
  %v1119 = vunpack.c.l.b16 %v1025
  %v1120 = vunpack.c.h.b16 %v1025
  %v1121 = vunpack.c.l.b16 %v1026
  %v1122 = vunpack.c.h.b16 %v1026
  %v1123 = vunpack.c.l.b16 %v1027
  %v1124 = vunpack.c.h.b16 %v1027
  %v1125 = vunpack.c.l.b16 %v1028
  %v1126 = vunpack.c.h.b16 %v1028
  %v1127 = vunpack.c.l.b16 %v1029
  %v1128 = vunpack.c.h.b16 %v1029
  %v1129 = vunpack.c.l.b16 %v1030
  %v1130 = vunpack.c.h.b16 %v1030
  %v1131 = vunpack.c.l.b16 %v1031
  %v1132 = vunpack.c.h.b16 %v1031
  %v1133 = vunpack.c.l.b16 %v1032
  %v1134 = vunpack.c.h.b16 %v1032
  %v1135 = vunpack.c.l.b16 %v1033
  %v1136 = vunpack.c.h.b16 %v1033
  %v1137 = vunpack.c.l.b16 %v1034
  %v1138 = vunpack.c.h.b16 %v1034
  %v1139 = vunpack.c.l.b16 %v1035
  %v1140 = vunpack.c.h.b16 %v1035
  %v1141 = vunpack.c.l.b16 %v1036
  %v1142 = vunpack.c.h.b16 %v1036
  %v1143 = vunpack.c.l.b16 %v1037
  %v1144 = vunpack.c.h.b16 %v1037
  %v1145 = vunpack.c.l.b16 %v1038
  %v1146 = vunpack.c.h.b16 %v1038
  %v1147 = vpack.c.b16 %v1085, %v1083
  %v1148 = vpack.c.b16 %v1086, %v1084
  %v1149 = vpack.c.b16 %v1089, %v1087
  %v1150 = vpack.c.b16 %v1090, %v1088
  %v1151 = vpack.c.b16 %v1093, %v1091
  %v1152 = vpack.c.b16 %v1094, %v1092
  %v1153 = vpack.c.b16 %v1097, %v1095
  %v1154 = vpack.c.b16 %v1098, %v1096
  %v1155 = vpack.c.b16 %v1101, %v1099
  %v1156 = vpack.c.b16 %v1102, %v1100
  %v1157 = vpack.c.b16 %v1105, %v1103
  %v1158 = vpack.c.b16 %v1106, %v1104
  %v1159 = vpack.c.b16 %v1109, %v1107
  %v1160 = vpack.c.b16 %v1110, %v1108
  %v1161 = vpack.c.b16 %v1113, %v1111
  %v1162 = vpack.c.b16 %v1114, %v1112
  %v1163 = vpack.c.b16 %v1117, %v1115
  %v1164 = vpack.c.b16 %v1118, %v1116
  %v1165 = vpack.c.b16 %v1121, %v1119
  %v1166 = vpack.c.b16 %v1122, %v1120
  %v1167 = vpack.c.b16 %v1125, %v1123
  %v1168 = vpack.c.b16 %v1126, %v1124
  %v1169 = vpack.c.b16 %v1129, %v1127
  %v1170 = vpack.c.b16 %v1130, %v1128
  %v1171 = vpack.c.b16 %v1133, %v1131
  %v1172 = vpack.c.b16 %v1134, %v1132
  %v1173 = vpack.c.b16 %v1137, %v1135
  %v1174 = vpack.c.b16 %v1138, %v1136
  %v1175 = vpack.c.b16 %v1141, %v1139
  %v1176 = vpack.c.b16 %v1142, %v1140
  %v1177 = vpack.c.b16 %v1145, %v1143
  %v1178 = vpack.c.b16 %v1146, %v1144
  %1211 = vmatprep.subr.bf16.mxu0 %v1148
  %1212 = vmatpush1.bf16.msra.mxu0 %v1147
  %1213 = vmatprep.subr.bf16.mxu0 %v1150
  %1214 = vmatpush1.bf16.msra.mxu0 %v1149
  %1215 = vmatprep.subr.bf16.mxu0 %v1152
  %1216 = vmatpush1.bf16.msra.mxu0 %v1151
  %1217 = vmatprep.subr.bf16.mxu0 %v1154
  %1218 = vmatpush1.bf16.msra.mxu0 %v1153
  %1219 = vmatprep.subr.bf16.mxu0 %v1156
  %1220 = vmatpush1.bf16.msra.mxu0 %v1155
  %1221 = vmatprep.subr.bf16.mxu0 %v1158
  %1222 = vmatpush1.bf16.msra.mxu0 %v1157
  %1223 = vmatprep.subr.bf16.mxu0 %v1160
  %1224 = vmatpush1.bf16.msra.mxu0 %v1159
  %1225 = vmatprep.subr.bf16.mxu0 %v1162
  %1226 = vmatpush1.bf16.msra.mxu0 %v1161
  %1227 = vmatprep.subr.bf16.mxu0 %v1164
  %1228 = vmatpush1.bf16.msra.mxu0 %v1163
  %1229 = vmatprep.subr.bf16.mxu0 %v1166
  %1230 = vmatpush1.bf16.msra.mxu0 %v1165
  %1231 = vmatprep.subr.bf16.mxu0 %v1168
  %1232 = vmatpush1.bf16.msra.mxu0 %v1167
  %1233 = vmatprep.subr.bf16.mxu0 %v1170
  %1234 = vmatpush1.bf16.msra.mxu0 %v1169
  %1235 = vmatprep.subr.bf16.mxu0 %v1172
  %1236 = vmatpush1.bf16.msra.mxu0 %v1171
  %1237 = vmatprep.subr.bf16.mxu0 %v1174
  %1238 = vmatpush1.bf16.msra.mxu0 %v1173
  %1239 = vmatprep.subr.bf16.mxu0 %v1176
  %1240 = vmatpush1.bf16.msra.mxu0 %v1175
  %1241 = vmatprep.subr.bf16.mxu0 %v1178
  %1242 = vmatpush1.bf16.msra.mxu0 %v1177
  %1243 = vmatprep.mubr.bf16.mxu0 %v1006
  %1244 = vmatmul.mubr.bf16.gmra.mrb[0].mxu0 %v1005
  %v1245 = vpop.f32.mrb[0].mxu0
  %v1246 = vadd.f32 %v1044, %v1245
  %v1247 = vpop.f32.mrb[0].mxu0
  %v1248 = vadd.f32 %v1048, %v1247
  %v1249 = vpop.f32.mrb[0].mxu0
  %v1250 = vpop.f32.mrb[0].mxu0
  %1251 = vdwg.mxu0
  %v1252 = vmax.f32 %v1246, 0.0
  %v1253 = vmax.f32 %v1248, 0.0
  %v1254 = vpack.c.bf16 %v1252, %v1252
  %v1255 = vpack.c.bf16 %v1253, %v1253
  %v1256 = vld [vmem:[%s5] sm:$0xf]
  %v1257 = vld [vmem:[%s5 + $0x4] sm:$0xf]
  %v1258 = vld [vmem:[%s5 + $0x8] sm:$0xf]
  %v1259 = vld [vmem:[%s5 + $0xc] sm:$0xf]
  %v1260 = vld [vmem:[%s5 + $0x10] sm:$0xf]
  %v1261 = vld [vmem:[%s5 + $0x14] sm:$0xf]
  %v1262 = vld [vmem:[%s5 + $0x18] sm:$0xf]
  %v1263 = vld [vmem:[%s5 + $0x1c] sm:$0xf]
  %v1264 = vld [vmem:[%s5 + $0x20] sm:$0xf]
  %v1265 = vld [vmem:[%s5 + $0x24] sm:$0xf]
  %v1266 = vld [vmem:[%s5 + $0x28] sm:$0xf]
  %v1267 = vld [vmem:[%s5 + $0x2c] sm:$0xf]
  %v1268 = vld [vmem:[%s5 + $0x30] sm:$0xf]
  %v1269 = vld [vmem:[%s5 + $0x34] sm:$0xf]
  %v1270 = vld [vmem:[%s5 + $0x38] sm:$0xf]
  %v1271 = vld [vmem:[%s5 + $0x3c] sm:$0xf]
  %v1272 = vld [vmem:[%s5 + $0x40] sm:$0xf]
  %v1273 = vld [vmem:[%s5 + $0x44] sm:$0xf]
  %v1274 = vld [vmem:[%s5 + $0x48] sm:$0xf]
  %v1275 = vld [vmem:[%s5 + $0x4c] sm:$0xf]
  %v1276 = vld [vmem:[%s5 + $0x50] sm:$0xf]
  %v1277 = vld [vmem:[%s5 + $0x54] sm:$0xf]
  %v1278 = vld [vmem:[%s5 + $0x58] sm:$0xf]
  %v1279 = vld [vmem:[%s5 + $0x5c] sm:$0xf]
  %v1280 = vld [vmem:[%s5 + $0x60] sm:$0xf]
  %v1281 = vld [vmem:[%s5 + $0x64] sm:$0xf]
  %v1282 = vld [vmem:[%s5 + $0x68] sm:$0xf]
  %v1283 = vld [vmem:[%s5 + $0x6c] sm:$0xf]
  %v1284 = vld [vmem:[%s5 + $0x70] sm:$0xf]
  %v1285 = vld [vmem:[%s5 + $0x74] sm:$0xf]
  %v1286 = vld [vmem:[%s5 + $0x78] sm:$0xf]
  %v1287 = vld [vmem:[%s5 + $0x7c] sm:$0xf]
  %v1288 = vld [vmem:[%s6] sm:$0x1]
  %v1290 = vlaneseq
  %v1291 = vshrl.u32 %v1290, 7
  %v1292 = vsub.s32 0, %v1291
  %v1293 = vrot.slane %v1288, %v1292
  %v1327 = vunpack.c.l.b16 %v1256
  %v1328 = vunpack.c.l.b16 %v1257
  %v1329 = vunpack.c.l.b16 %v1258
  %v1330 = vunpack.c.l.b16 %v1259
  %v1331 = vunpack.c.l.b16 %v1260
  %v1332 = vunpack.c.l.b16 %v1261
  %v1333 = vunpack.c.l.b16 %v1262
  %v1334 = vunpack.c.l.b16 %v1263
  %v1335 = vunpack.c.l.b16 %v1264
  %v1336 = vunpack.c.l.b16 %v1265
  %v1337 = vunpack.c.l.b16 %v1266
  %v1338 = vunpack.c.l.b16 %v1267
  %v1339 = vunpack.c.l.b16 %v1268
  %v1340 = vunpack.c.l.b16 %v1269
  %v1341 = vunpack.c.l.b16 %v1270
  %v1342 = vunpack.c.l.b16 %v1271
  %v1343 = vunpack.c.l.b16 %v1272
  %v1344 = vunpack.c.l.b16 %v1273
  %v1345 = vunpack.c.l.b16 %v1274
  %v1346 = vunpack.c.l.b16 %v1275
  %v1347 = vunpack.c.l.b16 %v1276
  %v1348 = vunpack.c.l.b16 %v1277
  %v1349 = vunpack.c.l.b16 %v1278
  %v1350 = vunpack.c.l.b16 %v1279
  %v1351 = vunpack.c.l.b16 %v1280
  %v1352 = vunpack.c.l.b16 %v1281
  %v1353 = vunpack.c.l.b16 %v1282
  %v1354 = vunpack.c.l.b16 %v1283
  %v1355 = vunpack.c.l.b16 %v1284
  %v1356 = vunpack.c.l.b16 %v1285
  %v1357 = vunpack.c.l.b16 %v1286
  %v1358 = vunpack.c.l.b16 %v1287
  %v1359 = vpack.c.b16 %v1328, %v1327
  %v1360 = vpack.c.b16 %v1330, %v1329
  %v1361 = vpack.c.b16 %v1332, %v1331
  %v1362 = vpack.c.b16 %v1334, %v1333
  %v1363 = vpack.c.b16 %v1336, %v1335
  %v1364 = vpack.c.b16 %v1338, %v1337
  %v1365 = vpack.c.b16 %v1340, %v1339
  %v1366 = vpack.c.b16 %v1342, %v1341
  %v1367 = vpack.c.b16 %v1344, %v1343
  %v1368 = vpack.c.b16 %v1346, %v1345
  %v1369 = vpack.c.b16 %v1348, %v1347
  %v1370 = vpack.c.b16 %v1350, %v1349
  %v1371 = vpack.c.b16 %v1352, %v1351
  %v1372 = vpack.c.b16 %v1354, %v1353
  %v1373 = vpack.c.b16 %v1356, %v1355
  %v1374 = vpack.c.b16 %v1358, %v1357
  %1391 = vmatprep.subr.bf16.mxu0 0
  %1392 = vmatpush1.bf16.msra.mxu0 %v1359
  %1393 = vmatprep.subr.bf16.mxu0 0
  %1394 = vmatpush1.bf16.msra.mxu0 %v1360
  %1395 = vmatprep.subr.bf16.mxu0 0
  %1396 = vmatpush1.bf16.msra.mxu0 %v1361
  %1397 = vmatprep.subr.bf16.mxu0 0
  %1398 = vmatpush1.bf16.msra.mxu0 %v1362
  %1399 = vmatprep.subr.bf16.mxu0 0
  %1400 = vmatpush1.bf16.msra.mxu0 %v1363
  %1401 = vmatprep.subr.bf16.mxu0 0
  %1402 = vmatpush1.bf16.msra.mxu0 %v1364
  %1403 = vmatprep.subr.bf16.mxu0 0
  %1404 = vmatpush1.bf16.msra.mxu0 %v1365
  %1405 = vmatprep.subr.bf16.mxu0 0
  %1406 = vmatpush1.bf16.msra.mxu0 %v1366
  %1407 = vmatprep.subr.bf16.mxu0 0
  %1408 = vmatpush1.bf16.msra.mxu0 %v1367
  %1409 = vmatprep.subr.bf16.mxu0 0
  %1410 = vmatpush1.bf16.msra.mxu0 %v1368
  %1411 = vmatprep.subr.bf16.mxu0 0
  %1412 = vmatpush1.bf16.msra.mxu0 %v1369
  %1413 = vmatprep.subr.bf16.mxu0 0
  %1414 = vmatpush1.bf16.msra.mxu0 %v1370
  %1415 = vmatprep.subr.bf16.mxu0 0
  %1416 = vmatpush1.bf16.msra.mxu0 %v1371
  %1417 = vmatprep.subr.bf16.mxu0 0
  %1418 = vmatpush1.bf16.msra.mxu0 %v1372
  %1419 = vmatprep.subr.bf16.mxu0 0
  %1420 = vmatpush1.bf16.msra.mxu0 %v1373
  %1421 = vmatprep.subr.bf16.mxu0 0
  %1422 = vmatpush1.bf16.msra.mxu0 %v1374
  %1423 = vmatprep.mubr.bf16.mxu0 %v1255
  %1424 = vmatmul.mubr.bf16.gmra.mrb[0].mxu0 %v1254
  %v1425 = vpop.f32.mrb[0].mxu0
  %v1426 = vadd.f32 %v1293, %v1425
  %v1427 = vpop.f32.mrb[0].mxu0
  %v1428 = vpop.f32.mrb[0].mxu0
  %v1429 = vpop.f32.mrb[0].mxu0
  %1430 = vdwg.mxu0
  %v1431 = vmax.f32 %v1426, 0.0
  %1432 = vst [vmem:[%s7] sm:$0xff] %v1431
  // Predicated region
  $region30: #{box_regression_forward.1} parent=0 // pred_check
    _
  $region31: #{box_regression_forward.1} parent=0 // pred_check_branch
    %1434 = sbr.rel (0) target = $region33
  $region32: #{box_regression_forward.1} parent=0 // pred_region
    _
  $region33: #{box_regression_forward.1} parent=0 // pred_fallthru
    _
  // Predicated region
  $region34: #{box_regression_forward.1} parent=0 // pred_check
    _
  $region35: #{box_regression_forward.1} parent=0 // pred_check_branch
    %1436 = sbr.rel (0) target = $region37
  $region36: #{box_regression_forward.1} parent=0 // pred_region
    _
  $region37: #{box_regression_forward.1} parent=0 // pred_fallthru
    _

</llo_original>
